<compile_context>
chip_gen: v6e
topology: v6e:2x2x1
jax: 0.10.0
libtpu: 0.0.40
codegen_flags: <defaults>
</compile_context>

<pallas_src>
import functools

import jax
import jax.numpy as jnp
from jax.experimental import pallas as pl
from jax.experimental.pallas import tpu as pltpu


def _round_up(x, m):
    return ((x + m - 1) // m) * m


# --------------------------------------------------------------------------
# Pallas kernel: fused sigmoid-gate + segmented dot-product scores
# --------------------------------------------------------------------------
def _score_kernel(walk_ref, emb_ref, rel_ref, rep_ref, sel_ref, out_ref):
    # walk_ref [T, D]   bf16  : walk-node embeddings
    # emb_ref  [T, S*D] bf16  : gathered context embeddings (pos segs, then neg)
    # rel_ref  [T, S*D] bf16  : gathered relationship embeddings (same layout)
    # rep_ref  [D, S*D] bf16  : 0/1 selector replicating walk across S segments
    # sel_ref  [S*D, S] bf16  : 0/1 selector doing the segment-sum over D
    # out_ref  [T, S]   f32   : per-segment scores
    #
    # Gate math in f32 (safe on v5e, which has no bf16 VPU/EUP); heavy MXU
    # operands stay bf16.
    gated = (emb_ref[...].astype(jnp.float32)
             * jax.nn.sigmoid(rel_ref[...].astype(jnp.float32)))        # [T, S*D]

    # Replicate the walk embedding across the S lane segments via a 0/1 bf16
    # matmul (exact: exactly one nonzero per output column).
    w_rep = jnp.dot(walk_ref[...], rep_ref[...],
                    preferred_element_type=jnp.float32)                  # [T, S*D]

    prod = (gated * w_rep).astype(jnp.bfloat16)                          # [T, S*D]

    # Segmented reduction over D on the MXU with f32 accumulation.
    out_ref[...] = jnp.dot(prod, sel_ref[...],
                           preferred_element_type=jnp.float32)           # [T, S]


def skipgram_scores(walk_emb, emb_cat, rel_cat, *, seg, dim, block_rows=1024):
    """walk_emb [N, D], emb_cat/rel_cat [N, seg*D] (bf16) -> scores [N, seg] f32."""
    N, D = walk_emb.shape
    segd = seg * dim
    assert emb_cat.shape == (N, segd) and rel_cat.shape == (N, segd)

    # Selector matrices built once in the wrapper (hoisted out of the kernel
    # body); their index_map returns the same block every grid step so Pallas
    # keeps them resident in VMEM without re-DMA.
    lanes = jnp.arange(segd, dtype=jnp.int32)
    rep = (lanes[None, :] % dim
           == jnp.arange(dim, dtype=jnp.int32)[:, None]).astype(jnp.bfloat16)   # [D, S*D]
    sel = (lanes[:, None] // dim
           == jnp.arange(seg, dtype=jnp.int32)[None, :]).astype(jnp.bfloat16)   # [S*D, S]

    # Big row tile; no wrapper-side padding — Pallas masks edge-block writes
    # and garbage tail-row scores are never consumed (no cross-row reduction).
    n_tile = min(block_rows, _round_up(N, 8))
    grid = (pl.cdiv(N, n_tile),)

    itemsize = walk_emb.dtype.itemsize
    in_bytes = ((walk_emb.size + emb_cat.size + rel_cat.size) * itemsize
                + rep.size * 2 + sel.size * 2)
    out_bytes = N * seg * 4
    cost = pl.CostEstimate(
        flops=int(N) * (2 * D * segd + 2 * segd * seg + 3 * segd),
        transcendentals=int(N) * segd,
        bytes_accessed=int(in_bytes + out_bytes),
    )

    return pl.pallas_call(
        _score_kernel,
        out_shape=jax.ShapeDtypeStruct((N, seg), jnp.float32),
        grid_spec=pltpu.PrefetchScalarGridSpec(
            num_scalar_prefetch=0,
            grid=grid,
            in_specs=[
                pl.BlockSpec((n_tile, D), lambda i: (i, 0)),
                pl.BlockSpec((n_tile, segd), lambda i: (i, 0)),
                pl.BlockSpec((n_tile, segd), lambda i: (i, 0)),
                pl.BlockSpec((D, segd), lambda i: (0, 0)),     # resident, no re-DMA
                pl.BlockSpec((segd, seg), lambda i: (0, 0)),   # resident, no re-DMA
            ],
            out_specs=pl.BlockSpec((n_tile, seg), lambda i: (i, 0)),
        ),
        compiler_params=pltpu.CompilerParams(
            dimension_semantics=("parallel",),
            vmem_limit_bytes=32 * 1024 * 1024,   # working set ~5 MiB at 1024 rows
        ),
        cost_estimate=cost,
    )(walk_emb, emb_cat, rel_cat, rep, sel)


# --------------------------------------------------------------------------
# Parameter init (matches nn.init.normal_(std=0.1)); stored in bf16.
# --------------------------------------------------------------------------
def init_params(key, node_num, type_num, dim, k):
    k1, k2 = jax.random.split(key)
    node_embedding = (0.1 * jax.random.normal(k1, (node_num, dim), jnp.float32)
                      ).astype(jnp.bfloat16)
    relationship_embedding = (0.1 * jax.random.normal(
        k2, (k * type_num * type_num, dim), jnp.float32)).astype(jnp.bfloat16)
    return node_embedding, relationship_embedding


# --------------------------------------------------------------------------
# Forward pass (glue in JAX, hot path in Pallas)
# --------------------------------------------------------------------------
@functools.partial(jax.jit, static_argnames=("type_num", "dim", "l", "k", "m"))
def balanced_skipgram_forward(params, walk, pos, neg, walk_type, pos_type,
                              neg_type, *, type_num, dim, l, k, m):
    node_emb, rel_emb = params
    B, LK = walk.shape
    assert LK == l - k
    KM = k * m
    S = k + KM
    N = B * LK

    # Pair-type integer arithmetic (mirrors torch exactly).
    pos_pair_type = type_num * walk_type[:, :, None] + pos_type                # [B,LK,K]
    neg_pair_type = type_num * walk_type[:, :, None, None] + neg_type          # [B,LK,K,M]
    pos_pair_type = (type_num * type_num
                     * jnp.arange(k, dtype=pos_pair_type.dtype)[None, None, :]
                     + pos_pair_type)
    neg_pair_type = (type_num * type_num
                     * jnp.arange(k, dtype=neg_pair_type.dtype)[None, None, :, None]
                     + neg_pair_type)

    # Concatenate the cheap int32 index arrays (NOT the gathered embeddings),
    # then one gather per table produces the kernel operands directly.
    idx_cat = jnp.concatenate(
        [pos.reshape(N, k), neg.reshape(N, KM)], axis=1)                       # [N, S] int
    pair_cat = jnp.concatenate(
        [pos_pair_type.reshape(N, k), neg_pair_type.reshape(N, KM)], axis=1)   # [N, S] int

    # TODO(synk): data-dependent embedding gathers stay in XLA; per-row 64 B
    # DMA gathers inside the kernel would be descriptor-bound.  A fused /
    # batched in-kernel gather (allow_input_fusion or scalar-prefetch Element
    # maps) is a possible further HBM-round-trip saving.
    walk_emb = node_emb[walk].reshape(N, dim)            # [N, D]    bf16
    emb_cat = node_emb[idx_cat].reshape(N, S * dim)      # [N, S*D]  bf16
    rel_cat = rel_emb[pair_cat].reshape(N, S * dim)      # [N, S*D]  bf16

    scores = skipgram_scores(walk_emb, emb_cat, rel_cat, seg=S, dim=dim)  # [N, S] f32
    pos_scores = scores[:, :k]
    neg_scores = scores[:, k:]

    return (pos_scores.reshape(-1),
            neg_scores.reshape(-1),
            pos_pair_type.reshape(-1),
            neg_pair_type.reshape(-1))


if __name__ == "__main__":
    # Small, shape-consistent configuration.
    node_num, type_num, dim = 32, 3, 32
    l, k, m = 10, 2, 3
    B = 2
    LK = l - k          # 8
    N = B * LK          # 16

    key = jax.random.PRNGKey(0)
    kp, kw, kpos, kneg, kwt, kpt, knt = jax.random.split(key, 7)

    params = init_params(kp, node_num, type_num, dim, k)

    walk = jax.random.randint(kw, (B, LK), 0, node_num, dtype=jnp.int32)
    pos = jax.random.randint(kpos, (B, LK, k), 0, node_num, dtype=jnp.int32)
    neg = jax.random.randint(kneg, (B, LK, k, m), 0, node_num, dtype=jnp.int32)
    walk_type = jax.random.randint(kwt, (B, LK), 0, type_num, dtype=jnp.int32)
    pos_type = jax.random.randint(kpt, (B, LK, k), 0, type_num, dtype=jnp.int32)
    neg_type = jax.random.randint(knt, (B, LK, k, m), 0, type_num, dtype=jnp.int32)

    out = balanced_skipgram_forward(
        params, walk, pos, neg, walk_type, pos_type, neg_type,
        type_num=type_num, dim=dim, l=l, k=k, m=m)
    out = jax.block_until_ready(out)
    pos_s, neg_s, pos_pt, neg_pt = out

    # Pure-JAX reference of the hot path (same bf16 inputs, f32 math).
    node_f32 = params[0].astype(jnp.float32)
    rel_f32 = params[1].astype(jnp.float32)
    ppt = (type_num * walk_type[:, :, None] + pos_type
           + type_num * type_num * jnp.arange(k)[None, None, :])
    npt = (type_num * walk_type[:, :, None, None] + neg_type
           + type_num * type_num * jnp.arange(k)[None, None, :, None])
    w_ref = node_f32[walk].reshape(N, dim)
    ref_pos = jnp.sum(w_ref[:, None, :]
                      * node_f32[pos].reshape(N, k, dim)
                      * jax.nn.sigmoid(rel_f32[ppt].reshape(N, k, dim)),
                      axis=-1).reshape(-1)
    ref_neg = jnp.sum(w_ref[:, None, :]
                      * node_f32[neg].reshape(N, k * m, dim)
                      * jax.nn.sigmoid(rel_f32[npt].reshape(N, k * m, dim)),
                      axis=-1).reshape(-1)

    assert pos_s.shape == (B * LK * k,)
    assert neg_s.shape == (B * LK * k * m,)
    assert pos_pt.shape == (B * LK * k,)
    assert neg_pt.shape == (B * LK * k * m,)
    assert jnp.array_equal(pos_pt, ppt.reshape(-1))
    assert jnp.array_equal(neg_pt, npt.reshape(-1))
    # The kernel rounds the gated product to bf16 before the MXU segment-sum
    # (perf review item); tolerance reflects that extra bf16 rounding.
    assert jnp.allclose(pos_s, ref_pos, atol=2e-3, rtol=1e-2)
    assert jnp.allclose(neg_s, ref_neg, atol=2e-3, rtol=1e-2)

    print("KERNEL_OK")
</pallas_src>

<mosaic_0001>
module attributes {stable_mosaic.version = 11 : i64} {
  func.func @_score_kernel(%arg0: i32, %arg1: memref<16x32xbf16, #tpu.memory_space<vmem>>, %arg2: memref<16x256xbf16, #tpu.memory_space<vmem>>, %arg3: memref<16x256xbf16, #tpu.memory_space<vmem>>, %arg4: memref<32x256xbf16, #tpu.memory_space<vmem>>, %arg5: memref<256x8xbf16, #tpu.memory_space<vmem>>, %arg6: memref<16x8xf32, #tpu.memory_space<vmem>>) attributes {dimension_semantics = [#tpu.dimension_semantics<parallel>], iteration_bounds = array<i64: 1>, scalar_prefetch = 0 : i64, scratch_operands = 0 : i64, tpu.core_type = #tpu.core_type<tc>, window_params = [{transform_indices = @transform_0, window_bounds = array<i64: 16, 32>}, {transform_indices = @transform_1, window_bounds = array<i64: 16, 256>}, {transform_indices = @transform_2, window_bounds = array<i64: 16, 256>}, {pipeline_mode = #tpu.pipeline_mode<synchronous>, transform_indices = @transform_3, window_bounds = array<i64: 32, 256>}, {pipeline_mode = #tpu.pipeline_mode<synchronous>, transform_indices = @transform_4, window_bounds = array<i64: 256, 8>}, {transform_indices = @transform_5, window_bounds = array<i64: 16, 8>}]} {
    %c0 = arith.constant 0 : index
    %c0_0 = arith.constant 0 : index
    %0 = vector.load %arg2[%c0, %c0_0] : memref<16x256xbf16, #tpu.memory_space<vmem>>, vector<16x256xbf16>
    %1 = arith.extf %0 : vector<16x256xbf16> to vector<16x256xf32>
    %c0_1 = arith.constant 0 : index
    %c0_2 = arith.constant 0 : index
    %2 = vector.load %arg3[%c0_1, %c0_2] : memref<16x256xbf16, #tpu.memory_space<vmem>>, vector<16x256xbf16>
    %3 = arith.extf %2 : vector<16x256xbf16> to vector<16x256xf32>
    %4 = arith.negf %3 : vector<16x256xf32>
    %5 = math.exp %4 : vector<16x256xf32>
    %cst = arith.constant 1.000000e+00 : f32
    %6 = vector.broadcast %cst : f32 to vector<16x256xf32>
    %7 = arith.addf %6, %5 : vector<16x256xf32>
    %8 = arith.divf %6, %7 : vector<16x256xf32>
    %9 = arith.mulf %1, %8 : vector<16x256xf32>
    %c0_3 = arith.constant 0 : index
    %c0_4 = arith.constant 0 : index
    %10 = vector.load %arg1[%c0_3, %c0_4] : memref<16x32xbf16, #tpu.memory_space<vmem>>, vector<16x32xbf16>
    %c0_5 = arith.constant 0 : index
    %c0_6 = arith.constant 0 : index
    %11 = vector.load %arg4[%c0_5, %c0_6] : memref<32x256xbf16, #tpu.memory_space<vmem>>, vector<32x256xbf16>
    %cst_7 = arith.constant dense<0.000000e+00> : vector<16x256xf32>
    %12 = tpu.matmul %10, %11, %cst_7 {dimension_numbers = #tpu.dot_dimension_numbers<[1], [0], [0], [1], [0, 0, 1, 1], [], []>} : vector<16x32xbf16>, vector<32x256xbf16>, vector<16x256xf32> -> vector<16x256xf32>
    %13 = arith.mulf %9, %12 : vector<16x256xf32>
    %14 = arith.truncf %13 : vector<16x256xf32> to vector<16x256xbf16>
    %c0_8 = arith.constant 0 : index
    %c0_9 = arith.constant 0 : index
    %15 = vector.load %arg5[%c0_8, %c0_9] : memref<256x8xbf16, #tpu.memory_space<vmem>>, vector<256x8xbf16>
    %cst_10 = arith.constant dense<0.000000e+00> : vector<16x8xf32>
    %16 = tpu.matmul %14, %15, %cst_10 {dimension_numbers = #tpu.dot_dimension_numbers<[1], [0], [0], [1], [0, 0, 1, 1], [], []>} : vector<16x256xbf16>, vector<256x8xbf16>, vector<16x8xf32> -> vector<16x8xf32>
    %c0_11 = arith.constant 0 : index
    %c0_12 = arith.constant 0 : index
    %17 = vector.load %arg6[%c0_11, %c0_12] : memref<16x8xf32, #tpu.memory_space<vmem>>, vector<16x8xf32>
    tpu.vector_store %arg6[%c0_11, %c0_12], %16 {strides = array<i32>} : memref<16x8xf32, #tpu.memory_space<vmem>>, vector<16x8xf32>,
    return
  }
  func.func @transform_0(%arg0: i32) -> (i32, i32) {
    %c0_i32 = arith.constant 0 : i32
    %c0_i32_0 = arith.constant 0 : i32
    return %arg0, %c0_i32 : i32, i32
  }
  func.func @transform_1(%arg0: i32) -> (i32, i32) {
    %c0_i32 = arith.constant 0 : i32
    %c0_i32_0 = arith.constant 0 : i32
    return %arg0, %c0_i32 : i32, i32
  }
  func.func @transform_2(%arg0: i32) -> (i32, i32) {
    %c0_i32 = arith.constant 0 : i32
    %c0_i32_0 = arith.constant 0 : i32
    return %arg0, %c0_i32 : i32, i32
  }
  func.func @transform_3(%arg0: i32) -> (i32, i32) {
    %c0_i32 = arith.constant 0 : i32
    %c0_i32_0 = arith.constant 0 : i32
    %c0_i32_1 = arith.constant 0 : i32
    return %c0_i32, %c0_i32_0 : i32, i32
  }
  func.func @transform_4(%arg0: i32) -> (i32, i32) {
    %c0_i32 = arith.constant 0 : i32
    %c0_i32_0 = arith.constant 0 : i32
    %c0_i32_1 = arith.constant 0 : i32
    return %c0_i32, %c0_i32_0 : i32, i32
  }
  func.func @transform_5(%arg0: i32) -> (i32, i32) {
    %c0_i32 = arith.constant 0 : i32
    %c0_i32_0 = arith.constant 0 : i32
    return %arg0, %c0_i32 : i32, i32
  }
}

</mosaic_0001>

<llo_original>
// kernel: balanced_skipgram_forward.1
$region0: #{balanced_skipgram_forward.1}
  #allocation0 [shape = 'u32[]', space=smem, size = 0x4, offset = 0x4, fixed_abs, tag = 'smem constant byte address 0x4 - core index']
  #allocation1 [shape = 'u32[144,128]{1,0:T(1,128)}', space=vmem, size = 0x12000, scoped, tag = 'internal scratch']
  %s0 = inlined_call_operand.vmem [shape: bf16[16,32], index: 0, kind: input, shape index: {}]
  %s1 = inlined_call_operand.vmem [shape: bf16[16,256], index: 1, kind: input, shape index: {}]
  %s2 = inlined_call_operand.vmem [shape: bf16[16,256], index: 2, kind: input, shape index: {}]
  %s3 = inlined_call_operand.vmem [shape: bf16[32,256], index: 3, kind: input, shape index: {}]
  %s4 = inlined_call_operand.vmem [shape: bf16[256,8], index: 4, kind: input, shape index: {}]
  %s5 = inlined_call_operand.vmem [shape: f32[16,8], index: 5, kind: output, shape index: {}]
  %s6 = sld [smem:[#allocation0]]
  $region30: #{balanced_skipgram_forward.1} parent=0
    _
  %s8 = ssub.s32 1, %s6
  %s9 = scalar_select 0, %s8, %s6
  // Predicated region
  $region2: #{balanced_skipgram_forward.1} parent=0 // pred_check
    _
  $region3: #{balanced_skipgram_forward.1} parent=0 // pred_check_branch
    %11 = sbr.rel (0) target = $region5
  $region4: #{balanced_skipgram_forward.1} parent=0 // pred_region
    _
  $region5: #{balanced_skipgram_forward.1} parent=0 // pred_fallthru
    _
  // Predicated region
  $region6: #{balanced_skipgram_forward.1} parent=0 // pred_check
    _
  $region7: #{balanced_skipgram_forward.1} parent=0 // pred_check_branch
    %13 = sbr.rel (0) target = $region9
  $region8: #{balanced_skipgram_forward.1} parent=0 // pred_region
    _
  $region9: #{balanced_skipgram_forward.1} parent=0 // pred_fallthru
    _
  // Predicated region
  $region10: #{balanced_skipgram_forward.1} parent=0 // pred_check
    _
  $region11: #{balanced_skipgram_forward.1} parent=0 // pred_check_branch
    %15 = sbr.rel (0) target = $region13
  $region12: #{balanced_skipgram_forward.1} parent=0 // pred_region
    _
  $region13: #{balanced_skipgram_forward.1} parent=0 // pred_fallthru
    _
  // Predicated region
  $region14: #{balanced_skipgram_forward.1} parent=0 // pred_check
    _
  $region15: #{balanced_skipgram_forward.1} parent=0 // pred_check_branch
    %17 = sbr.rel (0) target = $region17
  $region16: #{balanced_skipgram_forward.1} parent=0 // pred_region
    _
  $region17: #{balanced_skipgram_forward.1} parent=0 // pred_fallthru
    _
  // Predicated region
  $region18: #{balanced_skipgram_forward.1} parent=0 // pred_check
    _
  $region19: #{balanced_skipgram_forward.1} parent=0 // pred_check_branch
    %19 = sbr.rel (0) target = $region21
  $region20: #{balanced_skipgram_forward.1} parent=0 // pred_region
    _
  $region21: #{balanced_skipgram_forward.1} parent=0 // pred_fallthru
    _
  %v21 = vld [vmem:[%s1] sm:$0xff]
  %v22 = vld [vmem:[%s1 + $0x8] sm:$0xff]
  %v23 = vunpack.c.l.bf16 %v21
  %v24 = vunpack.c.h.bf16 %v21
  %v25 = vunpack.c.l.bf16 %v22
  %v26 = vunpack.c.h.bf16 %v22
  %v27 = vld [vmem:[%s2] sm:$0xff]
  %v28 = vld [vmem:[%s2 + $0x8] sm:$0xff]
  %v29 = vunpack.c.l.bf16 %v27
  %v30 = vunpack.c.h.bf16 %v27
  %v31 = vunpack.c.l.bf16 %v28
  %v32 = vunpack.c.h.bf16 %v28
  %v33 = vxor.u32 %v29, 2147483648
  %v34 = vxor.u32 %v30, 2147483648
  %v35 = vxor.u32 %v31, 2147483648
  %v36 = vxor.u32 %v32, 2147483648
  %v37 = vmul.f32 %v33, 1.442695
  %v38 = vpow.pop %v37
  %v39 = vmul.f32 %v34, 1.442695
  %v40 = vpow.pop %v39
  %v41 = vmul.f32 %v35, 1.442695
  %v42 = vpow.pop %v41
  %v43 = vmul.f32 %v36, 1.442695
  %v44 = vpow.pop %v43
  %v45 = vadd.f32 %v38, 1.0
  %v46 = vadd.f32 %v40, 1.0
  %v47 = vadd.f32 %v42, 1.0
  %v48 = vadd.f32 %v44, 1.0
  %v49 = vrcp.pop %v45
  %v50 = vmul.f32 1.0, %v49
  %v51 = vrcp.pop %v46
  %v52 = vmul.f32 1.0, %v51
  %v53 = vrcp.pop %v47
  %v54 = vmul.f32 1.0, %v53
  %v55 = vrcp.pop %v48
  %v56 = vmul.f32 1.0, %v55
  %v57 = vmul.f32 %v23, %v50
  %v58 = vmul.f32 %v24, %v52
  %v59 = vmul.f32 %v25, %v54
  %v60 = vmul.f32 %v26, %v56
  %v61 = vld [vmem:[%s0] sm:$0xf]
  %v62 = vld [vmem:[%s0 + $0x4] sm:$0xf]
  %v63 = vld [vmem:[%s3] sm:$0xff]
  %v64 = vld [vmem:[%s3 + $0x8] sm:$0xff]
  %v65 = vld [vmem:[%s3 + $0x10] sm:$0xff]
  %v66 = vld [vmem:[%s3 + $0x18] sm:$0xff]
  %v69 = vunpack.c.l.b16 %v61
  %v70 = vunpack.c.l.b16 %v62
  %v71 = vpack.c.b16 %v70, %v69
  %v76 = vunpack.c.l.b16 %v63
  %v77 = vunpack.c.h.b16 %v63
  %v78 = vunpack.c.l.b16 %v64
  %v79 = vunpack.c.h.b16 %v64
  %v80 = vunpack.c.l.b16 %v65
  %v81 = vunpack.c.h.b16 %v65
  %v82 = vunpack.c.l.b16 %v66
  %v83 = vunpack.c.h.b16 %v66
  %v84 = vpack.c.b16 %v78, %v76
  %v85 = vpack.c.b16 %v79, %v77
  %v86 = vpack.c.b16 %v82, %v80
  %v87 = vpack.c.b16 %v83, %v81
  %vm92 = vcmask 261120
  %v94 = vsel %vm92, %v71, 0
  %96 = vmatprep.subr.bf16.mxu0 0
  %97 = vmatpush1.bf16.msra.mxu0 0
  %98 = vmatprep.subr.bf16.mxu0 0
  %99 = vmatpush1.bf16.msra.mxu0 0
  %100 = vmatprep.subr.bf16.mxu0 0
  %101 = vmatpush1.bf16.msra.mxu0 0
  %102 = vmatprep.subr.bf16.mxu0 0
  %103 = vmatpush1.bf16.msra.mxu0 0
  %104 = vmatprep.subr.bf16.mxu0 0
  %105 = vmatpush1.bf16.msra.mxu0 0
  %106 = vmatprep.subr.bf16.mxu0 0
  %107 = vmatpush1.bf16.msra.mxu0 0
  %108 = vmatprep.subr.bf16.mxu0 %v87
  %109 = vmatpush1.bf16.msra.mxu0 %v86
  %110 = vmatprep.subr.bf16.mxu0 %v85
  %111 = vmatpush1.bf16.msra.mxu0 %v84
  %112 = vmatprep.subr.bf16.mxu0 0
  %113 = vmatpush2.bf16.msra.mxu0 0
  %114 = vmatprep.subr.bf16.mxu0 0
  %115 = vmatpush2.bf16.msra.mxu0 0
  %116 = vmatprep.subr.bf16.mxu0 0
  %117 = vmatpush2.bf16.msra.mxu0 0
  %118 = vmatprep.subr.bf16.mxu0 0
  %119 = vmatpush2.bf16.msra.mxu0 0
  %120 = vmatprep.subr.bf16.mxu0 0
  %121 = vmatpush2.bf16.msra.mxu0 0
  %122 = vmatprep.subr.bf16.mxu0 0
  %123 = vmatpush2.bf16.msra.mxu0 0
  %124 = vmatprep.subr.bf16.mxu0 0
  %125 = vmatpush2.bf16.msra.mxu0 0
  %126 = vmatprep.subr.bf16.mxu0 0
  %127 = vmatpush2.bf16.msra.mxu0 0
  %128 = vmatprep.mubr.bf16.mxu0 0
  %129 = vmatmul.mubr.bf16.gmra.mxu0 %v94
  %v130 = vpop.f32.mrf.mxu0
  %v131 = vadd.f32 0.0, %v130
  %v132 = vpop.f32.mrf.mxu0
  %v133 = vadd.f32 0.0, %v132
  %v134 = vpop.f32.mrf.mxu0
  %v135 = vadd.f32 0.0, %v134
  %v136 = vpop.f32.mrf.mxu0
  %v137 = vadd.f32 0.0, %v136
  %138 = vdwg.mxu0
  %v139 = vmul.f32 %v57, %v131
  %v140 = vmul.f32 %v58, %v133
  %v141 = vmul.f32 %v59, %v135
  %v142 = vmul.f32 %v60, %v137
  %v143 = vpack.c.bf16 %v141, %v139
  %v144 = vpack.c.bf16 %v142, %v140
  %v145 = vld [vmem:[%s4] sm:$0xf]
  %v146 = vld [vmem:[%s4 + $0x4] sm:$0xf]
  %v147 = vld [vmem:[%s4 + $0x8] sm:$0xf]
  %v148 = vld [vmem:[%s4 + $0xc] sm:$0xf]
  %v149 = vld [vmem:[%s4 + $0x10] sm:$0xf]
  %v150 = vld [vmem:[%s4 + $0x14] sm:$0xf]
  %v151 = vld [vmem:[%s4 + $0x18] sm:$0xf]
  %v152 = vld [vmem:[%s4 + $0x1c] sm:$0xf]
  %v153 = vld [vmem:[%s4 + $0x20] sm:$0xf]
  %v154 = vld [vmem:[%s4 + $0x24] sm:$0xf]
  %v155 = vld [vmem:[%s4 + $0x28] sm:$0xf]
  %v156 = vld [vmem:[%s4 + $0x2c] sm:$0xf]
  %v157 = vld [vmem:[%s4 + $0x30] sm:$0xf]
  %v158 = vld [vmem:[%s4 + $0x34] sm:$0xf]
  %v159 = vld [vmem:[%s4 + $0x38] sm:$0xf]
  %v160 = vld [vmem:[%s4 + $0x3c] sm:$0xf]
  %v161 = vld [vmem:[%s4 + $0x40] sm:$0xf]
  %v162 = vld [vmem:[%s4 + $0x44] sm:$0xf]
  %v163 = vld [vmem:[%s4 + $0x48] sm:$0xf]
  %v164 = vld [vmem:[%s4 + $0x4c] sm:$0xf]
  %v165 = vld [vmem:[%s4 + $0x50] sm:$0xf]
  %v166 = vld [vmem:[%s4 + $0x54] sm:$0xf]
  %v167 = vld [vmem:[%s4 + $0x58] sm:$0xf]
  %v168 = vld [vmem:[%s4 + $0x5c] sm:$0xf]
  %v169 = vld [vmem:[%s4 + $0x60] sm:$0xf]
  %v170 = vld [vmem:[%s4 + $0x64] sm:$0xf]
  %v171 = vld [vmem:[%s4 + $0x68] sm:$0xf]
  %v172 = vld [vmem:[%s4 + $0x6c] sm:$0xf]
  %v173 = vld [vmem:[%s4 + $0x70] sm:$0xf]
  %v174 = vld [vmem:[%s4 + $0x74] sm:$0xf]
  %v175 = vld [vmem:[%s4 + $0x78] sm:$0xf]
  %v176 = vld [vmem:[%s4 + $0x7c] sm:$0xf]
  %v209 = vunpack.c.l.b16 %v145
  %v210 = vunpack.c.l.b16 %v146
  %v211 = vunpack.c.l.b16 %v147
  %v212 = vunpack.c.l.b16 %v148
  %v213 = vunpack.c.l.b16 %v149
  %v214 = vunpack.c.l.b16 %v150
  %v215 = vunpack.c.l.b16 %v151
  %v216 = vunpack.c.l.b16 %v152
  %v217 = vunpack.c.l.b16 %v153
  %v218 = vunpack.c.l.b16 %v154
  %v219 = vunpack.c.l.b16 %v155
  %v220 = vunpack.c.l.b16 %v156
  %v221 = vunpack.c.l.b16 %v157
  %v222 = vunpack.c.l.b16 %v158
  %v223 = vunpack.c.l.b16 %v159
  %v224 = vunpack.c.l.b16 %v160
  %v225 = vunpack.c.l.b16 %v161
  %v226 = vunpack.c.l.b16 %v162
  %v227 = vunpack.c.l.b16 %v163
  %v228 = vunpack.c.l.b16 %v164
  %v229 = vunpack.c.l.b16 %v165
  %v230 = vunpack.c.l.b16 %v166
  %v231 = vunpack.c.l.b16 %v167
  %v232 = vunpack.c.l.b16 %v168
  %v233 = vunpack.c.l.b16 %v169
  %v234 = vunpack.c.l.b16 %v170
  %v235 = vunpack.c.l.b16 %v171
  %v236 = vunpack.c.l.b16 %v172
  %v237 = vunpack.c.l.b16 %v173
  %v238 = vunpack.c.l.b16 %v174
  %v239 = vunpack.c.l.b16 %v175
  %v240 = vunpack.c.l.b16 %v176
  %v241 = vpack.c.b16 %v210, %v209
  %v242 = vpack.c.b16 %v212, %v211
  %v243 = vpack.c.b16 %v214, %v213
  %v244 = vpack.c.b16 %v216, %v215
  %v245 = vpack.c.b16 %v218, %v217
  %v246 = vpack.c.b16 %v220, %v219
  %v247 = vpack.c.b16 %v222, %v221
  %v248 = vpack.c.b16 %v224, %v223
  %v249 = vpack.c.b16 %v226, %v225
  %v250 = vpack.c.b16 %v228, %v227
  %v251 = vpack.c.b16 %v230, %v229
  %v252 = vpack.c.b16 %v232, %v231
  %v253 = vpack.c.b16 %v234, %v233
  %v254 = vpack.c.b16 %v236, %v235
  %v255 = vpack.c.b16 %v238, %v237
  %v256 = vpack.c.b16 %v240, %v239
  %273 = vmatprep.subr.bf16.mxu0 0
  %274 = vmatpush1.bf16.msra.mxu0 %v248
  %275 = vmatprep.subr.bf16.mxu0 0
  %276 = vmatpush1.bf16.msra.mxu0 %v247
  %277 = vmatprep.subr.bf16.mxu0 0
  %278 = vmatpush1.bf16.msra.mxu0 %v246
  %279 = vmatprep.subr.bf16.mxu0 0
  %280 = vmatpush1.bf16.msra.mxu0 %v245
  %281 = vmatprep.subr.bf16.mxu0 0
  %282 = vmatpush1.bf16.msra.mxu0 %v244
  %283 = vmatprep.subr.bf16.mxu0 0
  %284 = vmatpush1.bf16.msra.mxu0 %v243
  %285 = vmatprep.subr.bf16.mxu0 0
  %286 = vmatpush1.bf16.msra.mxu0 %v242
  %287 = vmatprep.subr.bf16.mxu0 0
  %288 = vmatpush1.bf16.msra.mxu0 %v241
  %289 = vmatprep.subr.bf16.mxu0 0
  %290 = vmatpush2.bf16.msra.mxu0 %v256
  %291 = vmatprep.subr.bf16.mxu0 0
  %292 = vmatpush2.bf16.msra.mxu0 %v255
  %293 = vmatprep.subr.bf16.mxu0 0
  %294 = vmatpush2.bf16.msra.mxu0 %v254
  %295 = vmatprep.subr.bf16.mxu0 0
  %296 = vmatpush2.bf16.msra.mxu0 %v253
  %297 = vmatprep.subr.bf16.mxu0 0
  %298 = vmatpush2.bf16.msra.mxu0 %v252
  %299 = vmatprep.subr.bf16.mxu0 0
  %300 = vmatpush2.bf16.msra.mxu0 %v251
  %301 = vmatprep.subr.bf16.mxu0 0
  %302 = vmatpush2.bf16.msra.mxu0 %v250
  %303 = vmatprep.subr.bf16.mxu0 0
  %304 = vmatpush2.bf16.msra.mxu0 %v249
  %305 = vmatprep.mubr.bf16.mxu0 %v144
  %306 = vmatmul.mubr.bf16.gmra.mxu0 %v143
  %v307 = vpop.f32.mrf.mxu0
  %v308 = vadd.f32 0.0, %v307
  %v309 = vpop.f32.mrf.mxu0
  %v310 = vpop.f32.mrf.mxu0
  %v311 = vadd.f32 0.0, %v310
  %v312 = vpop.f32.mrf.mxu0
  %313 = vdwg.mxu0
  %vm314 = vcmask 64512
  %315 = vst.msk [vmem:[%s5] sm:$0xff] %vm314, %v308
  %316 = vst.msk [vmem:[%s5 + $0x8] sm:$0xff] %vm314, %v311
  // Predicated region
  $region22: #{balanced_skipgram_forward.1} parent=0 // pred_check
    _
  $region23: #{balanced_skipgram_forward.1} parent=0 // pred_check_branch
    %318 = sbr.rel (0) target = $region25
  $region24: #{balanced_skipgram_forward.1} parent=0 // pred_region
    _
  $region25: #{balanced_skipgram_forward.1} parent=0 // pred_fallthru
    _
  // Predicated region
  $region26: #{balanced_skipgram_forward.1} parent=0 // pred_check
    _
  $region27: #{balanced_skipgram_forward.1} parent=0 // pred_check_branch
    %320 = sbr.rel (0) target = $region29
  $region28: #{balanced_skipgram_forward.1} parent=0 // pred_region
    _
  $region29: #{balanced_skipgram_forward.1} parent=0 // pred_fallthru
    _

</llo_original>
